<compile_context>
chip_gen: v5e
topology: v5e:2x2
jax: 0.10.0
libtpu: 0.0.40
codegen_flags: <defaults>
</compile_context>

<pallas_src>
import functools

import jax
import jax.numpy as jnp
from jax.experimental import pallas as pl
from jax.experimental.pallas import tpu as pltpu


# ---------------------------------------------------------------------------
# Kernel
# ---------------------------------------------------------------------------
def _value_net_kernel(xt_ref, w1t_ref, b1_ref, w2_ref, b2_ref, out_ref, *, chunk):
    """Batch-on-lanes fused MLP.

    xt_ref : [S, TB]   input features, batch on lanes
    w1t_ref: [H, S]    W1^T (VMEM-resident across the grid)
    b1_ref : [H, 1]
    w2_ref : [H, 1]
    b2_ref : [1]       scalar bias in SMEM
    out_ref: [1, TB]   lane-dense value row
    """
    S, TB = xt_ref.shape

    # Tiny weights: load once per grid step, live in a handful of vregs.
    w1t = w1t_ref[...]          # [H, S]
    b1 = b1_ref[...]            # [H, 1]
    w2 = w2_ref[...]            # [H, 1]
    b2 = b2_ref[0]              # scalar (single sld from SMEM)

    # Static chunk loop over lanes: keeps h [H, chunk] + temporaries inside the
    # vreg budget while the grid step stays large enough to amortize the
    # ~0.35us per-step pipeline overhead.
    for c in range(TB // chunk):
        sl = pl.ds(c * chunk, chunk)            # static start, lane-aligned
        x = xt_ref[:, sl]                       # [S, chunk]

        # Layer 1: h = relu(W1^T @ x + b1) as S=4 broadcast-FMAs (pure VPU).
        #   w1t[:, k]  -> lane-splat   ([H,1] -> [H,chunk])
        #   x[k, :]    -> sublane-splat([1,chunk] -> [H,chunk])
        h = w1t[:, 0:1] * x[0:1, :]
        for k in range(1, S):
            h = h + w1t[:, k:k + 1] * x[k:k + 1, :]
        h = jnp.maximum(h + b1, 0.0)            # [H, chunk]

        # Layer 2: v = w2^T h + b2 — multiply + 24-sublane reduce (no 128-lane
        # cross-lane reduce), result is already lane-dense.
        v = jnp.sum(h * w2, axis=0, keepdims=True) + b2   # [1, chunk]

        out_ref[:, sl] = v.astype(out_ref.dtype)


# ---------------------------------------------------------------------------
# Tiling / wrapper
# ---------------------------------------------------------------------------
_CHUNK = 512          # in-kernel lane chunk (multiple of 128)


def _round_up(n, m):
    return ((n + m - 1) // m) * m


def _cdiv(a, b):
    return -(-a // b)


def _pick_tiles(batch, tb_target, chunk):
    """Choose (tb, b_pad, nb): tb multiple of chunk, b_pad = nb * tb >= batch,
    nb >= 2 whenever there is enough work (keeps both v7x TensorCores busy)."""
    b_ch = _round_up(max(batch, 1), chunk)
    nb = max(1, _cdiv(b_ch, tb_target))
    if b_ch >= 2 * chunk:
        nb = max(nb, 2)
    tb = _round_up(_cdiv(b_ch, nb), chunk)
    return tb, nb * tb, nb


def _value_net_pallas(xt, w1, b1, w2, b2, tb, chunk):
    """xt: [S, b_pad] (batch on lanes, b_pad = nb*tb). Returns [1, b_pad]."""
    S, b_pad = xt.shape
    H = w1.shape[1]
    assert tb % chunk == 0 and b_pad % tb == 0
    nb = b_pad // tb

    w1t = jnp.transpose(w1)          # [H, S] — 384 bytes, negligible
    b1c = b1.reshape(H, 1)
    w2c = w2.reshape(H, 1)
    b2s = b2.reshape(1)

    kernel = functools.partial(_value_net_kernel, chunk=chunk)

    return pl.pallas_call(
        kernel,
        out_shape=jax.ShapeDtypeStruct((1, b_pad), jnp.float32),
        grid=(nb,),
        in_specs=[
            pl.BlockSpec((S, tb), lambda i: (0, i)),             # x^T (batch on lanes)
            pl.BlockSpec((H, S), lambda i: (0, 0)),              # W1^T (resident)
            pl.BlockSpec((H, 1), lambda i: (0, 0)),              # b1   (resident)
            pl.BlockSpec((H, 1), lambda i: (0, 0)),              # w2   (resident)
            pl.BlockSpec(memory_space=pltpu.MemorySpace.SMEM),   # b2 scalar
        ],
        out_specs=pl.BlockSpec((1, tb), lambda i: (0, i)),       # lane-dense row
        compiler_params=pltpu.CompilerParams(
            dimension_semantics=("parallel",)),
    )(xt, w1t, b1c, w2c, b2s)


def value_net_forward(x, w1, b1, w2, b2, *, tb=16384, chunk=_CHUNK,
                      min_pallas_batch=1024):
    """x: [B, S] float32 -> [B, 1] float32 (== relu(x@W1+b1)@W2+b2)."""
    B, S = x.shape
    x = x.astype(jnp.float32)

    # Small-batch bypass: at PPO's per-step B (a handful of rows) the kernel is
    # pure launch/DMA overhead; XLA fusion is strictly faster.  Also handles B=0.
    if B < min_pallas_batch:
        h = jnp.maximum(
            jnp.dot(x, w1, precision=jax.lax.Precision.HIGHEST) + b1, 0.0)
        return jnp.dot(h, w2, precision=jax.lax.Precision.HIGHEST) + b2.reshape(1, 1)

    tb_eff, b_pad, _ = _pick_tiles(B, tb, chunk)

    # Pad (rows beyond B compute relu(b1)@w2+b2 garbage, sliced off below) and
    # relayout to [S, b_pad] so batch sits on lanes.  One fused XLA pass.
    # TODO(synk): have the rollout producer emit x already as [S, B] to skip it.
    x_p = x if b_pad == B else jnp.pad(x, ((0, b_pad - B), (0, 0)))
    xt = x_p.T                                              # [S, b_pad]

    out_row = _value_net_pallas(xt, w1, b1, w2, b2, tb_eff, chunk)   # [1, b_pad]
    return out_row[0, :B].reshape(B, 1)


# ---------------------------------------------------------------------------
# Params / demo
# ---------------------------------------------------------------------------
def init_params(key, state_space=4, hidden=24):
    """Deterministic init mimicking nn.Linear's uniform(-1/sqrt(fan_in), +...)."""
    k1, k2, k3, k4 = jax.random.split(key, 4)
    bound1 = 1.0 / jnp.sqrt(state_space)
    bound2 = 1.0 / jnp.sqrt(hidden)
    w1 = jax.random.uniform(k1, (state_space, hidden), jnp.float32, -bound1, bound1)
    b1 = jax.random.uniform(k2, (hidden,), jnp.float32, -bound1, bound1)
    w2 = jax.random.uniform(k3, (hidden, 1), jnp.float32, -bound2, bound2)
    b2 = jax.random.uniform(k4, (1,), jnp.float32, -bound2, bound2)
    return w1, b1, w2, b2


if __name__ == "__main__":
    key = jax.random.PRNGKey(0)
    k_params, k_x1, k_x2 = jax.random.split(key, 3)

    STATE_SPACE = 4   # CartPole-v1 observation_space.shape[0]
    HIDDEN = 24

    w1, b1, w2, b2 = init_params(k_params, STATE_SPACE, HIDDEN)

    def ref_fn(xx):
        h = jnp.maximum(
            jnp.dot(xx, w1, precision=jax.lax.Precision.HIGHEST) + b1, 0.0)
        return jnp.dot(h, w2, precision=jax.lax.Precision.HIGHEST) + b2.reshape(1, 1)

    # 1) Moderate batch through the Pallas path (multi-block grid + chunk loop).
    B1 = 2048
    x1 = jax.random.normal(k_x1, (B1, STATE_SPACE), jnp.float32)
    out1 = jax.block_until_ready(value_net_forward(x1, w1, b1, w2, b2))
    assert out1.shape == (B1, 1)
    assert jnp.allclose(out1, ref_fn(x1), atol=1e-5, rtol=1e-5)

    # 2) Ragged batch forced through the kernel (exercises padding + slice-back).
    B2 = 1000
    x2 = jax.random.normal(k_x2, (B2, STATE_SPACE), jnp.float32)
    out2 = jax.block_until_ready(
        value_net_forward(x2, w1, b1, w2, b2, min_pallas_batch=0))
    assert out2.shape == (B2, 1)
    assert jnp.allclose(out2, ref_fn(x2), atol=1e-5, rtol=1e-5)

    # 3) Tiny batch (B=8, PPO's per-step use) takes the small-batch bypass.
    x3 = x2[:8]
    out3 = jax.block_until_ready(value_net_forward(x3, w1, b1, w2, b2))
    assert out3.shape == (8, 1)
    assert jnp.allclose(out3, ref_fn(x3), atol=1e-5, rtol=1e-5)

    print("KERNEL_OK")
</pallas_src>

<mosaic_0001>
module attributes {stable_mosaic.version = 11 : i64} {
  func.func @_value_net_kernel(%arg0: i32, %arg1: memref<4x1024xf32, #tpu.memory_space<vmem>>, %arg2: memref<24x4xf32, #tpu.memory_space<vmem>>, %arg3: memref<24x1xf32, #tpu.memory_space<vmem>>, %arg4: memref<24x1xf32, #tpu.memory_space<vmem>>, %arg5: memref<1xf32, #tpu.memory_space<smem>>, %arg6: memref<1x1024xf32, #tpu.memory_space<vmem>>) attributes {dimension_semantics = [#tpu.dimension_semantics<parallel>], iteration_bounds = array<i64: 2>, scalar_prefetch = 0 : i64, scratch_operands = 0 : i64, tpu.core_type = #tpu.core_type<tc>, window_params = [{transform_indices = @transform_0, window_bounds = array<i64: 4, 1024>}, {pipeline_mode = #tpu.pipeline_mode<synchronous>, transform_indices = @transform_1, window_bounds = array<i64: 24, 4>}, {pipeline_mode = #tpu.pipeline_mode<synchronous>, transform_indices = @transform_2, window_bounds = array<i64: 24, 1>}, {pipeline_mode = #tpu.pipeline_mode<synchronous>, transform_indices = @transform_3, window_bounds = array<i64: 24, 1>}, {transform_indices = @transform_4, window_bounds = array<i64: 1>}, {transform_indices = @transform_5, window_bounds = array<i64: 1, 1024>}]} {
    %c0 = arith.constant 0 : index
    %c0_0 = arith.constant 0 : index
    %0 = vector.load %arg2[%c0, %c0_0] : memref<24x4xf32, #tpu.memory_space<vmem>>, vector<24x4xf32>
    %c0_1 = arith.constant 0 : index
    %c0_2 = arith.constant 0 : index
    %1 = vector.load %arg3[%c0_1, %c0_2] : memref<24x1xf32, #tpu.memory_space<vmem>>, vector<24x1xf32>
    %c0_3 = arith.constant 0 : index
    %c0_4 = arith.constant 0 : index
    %2 = vector.load %arg4[%c0_3, %c0_4] : memref<24x1xf32, #tpu.memory_space<vmem>>, vector<24x1xf32>
    %c0_5 = arith.constant 0 : index
    %3 = memref.load %arg5[%c0_5] : memref<1xf32, #tpu.memory_space<smem>>
    %c0_6 = arith.constant 0 : index
    %c0_7 = arith.constant 0 : index
    %4 = vector.load %arg1[%c0_6, %c0_7] : memref<4x1024xf32, #tpu.memory_space<vmem>>, vector<4x512xf32>
    %5 = vector.extract_strided_slice %0 {offsets = [0, 0], sizes = [24, 1], strides = [1, 1]} : vector<24x4xf32> to vector<24x1xf32>
    %6 = vector.extract_strided_slice %4 {offsets = [0, 0], sizes = [1, 512], strides = [1, 1]} : vector<4x512xf32> to vector<1x512xf32>
    %7 = vector.broadcast %5 : vector<24x1xf32> to vector<24x512xf32>
    %8 = vector.broadcast %6 : vector<1x512xf32> to vector<24x512xf32>
    %9 = arith.mulf %7, %8 : vector<24x512xf32>
    %10 = vector.extract_strided_slice %0 {offsets = [0, 1], sizes = [24, 1], strides = [1, 1]} : vector<24x4xf32> to vector<24x1xf32>
    %11 = vector.extract_strided_slice %4 {offsets = [1, 0], sizes = [1, 512], strides = [1, 1]} : vector<4x512xf32> to vector<1x512xf32>
    %12 = vector.broadcast %10 : vector<24x1xf32> to vector<24x512xf32>
    %13 = vector.broadcast %11 : vector<1x512xf32> to vector<24x512xf32>
    %14 = arith.mulf %12, %13 : vector<24x512xf32>
    %15 = arith.addf %9, %14 : vector<24x512xf32>
    %16 = vector.extract_strided_slice %0 {offsets = [0, 2], sizes = [24, 1], strides = [1, 1]} : vector<24x4xf32> to vector<24x1xf32>
    %17 = vector.extract_strided_slice %4 {offsets = [2, 0], sizes = [1, 512], strides = [1, 1]} : vector<4x512xf32> to vector<1x512xf32>
    %18 = vector.broadcast %16 : vector<24x1xf32> to vector<24x512xf32>
    %19 = vector.broadcast %17 : vector<1x512xf32> to vector<24x512xf32>
    %20 = arith.mulf %18, %19 : vector<24x512xf32>
    %21 = arith.addf %15, %20 : vector<24x512xf32>
    %22 = vector.extract_strided_slice %0 {offsets = [0, 3], sizes = [24, 1], strides = [1, 1]} : vector<24x4xf32> to vector<24x1xf32>
    %23 = vector.extract_strided_slice %4 {offsets = [3, 0], sizes = [1, 512], strides = [1, 1]} : vector<4x512xf32> to vector<1x512xf32>
    %24 = vector.broadcast %22 : vector<24x1xf32> to vector<24x512xf32>
    %25 = vector.broadcast %23 : vector<1x512xf32> to vector<24x512xf32>
    %26 = arith.mulf %24, %25 : vector<24x512xf32>
    %27 = arith.addf %21, %26 : vector<24x512xf32>
    %28 = vector.broadcast %1 : vector<24x1xf32> to vector<24x512xf32>
    %29 = arith.addf %27, %28 : vector<24x512xf32>
    %cst = arith.constant 0.000000e+00 : f32
    %30 = vector.broadcast %cst : f32 to vector<24x512xf32>
    %31 = arith.maximumf %29, %30 : vector<24x512xf32>
    %32 = vector.broadcast %2 : vector<24x1xf32> to vector<24x512xf32>
    %33 = arith.mulf %31, %32 : vector<24x512xf32>
    %cst_8 = arith.constant dense<0.000000e+00> : vector<512xf32>
    %34 = vector.multi_reduction <add>, %33, %cst_8 [0] : vector<24x512xf32> to vector<512xf32>
    %35 = vector.shape_cast %34 : vector<512xf32> to vector<1x512xf32>
    %36 = vector.broadcast %3 : f32 to vector<1x512xf32>
    %37 = arith.addf %35, %36 : vector<1x512xf32>
    %c0_9 = arith.constant 0 : index
    %c0_10 = arith.constant 0 : index
    %38 = vector.load %arg6[%c0_9, %c0_10] : memref<1x1024xf32, #tpu.memory_space<vmem>>, vector<1x512xf32>
    tpu.vector_store %arg6[%c0_9, %c0_10], %37 {strides = array<i32>} : memref<1x1024xf32, #tpu.memory_space<vmem>>, vector<1x512xf32>,
    %c0_11 = arith.constant 0 : index
    %c512 = arith.constant 512 : index
    %39 = vector.load %arg1[%c0_11, %c512] : memref<4x1024xf32, #tpu.memory_space<vmem>>, vector<4x512xf32>
    %40 = vector.extract_strided_slice %0 {offsets = [0, 0], sizes = [24, 1], strides = [1, 1]} : vector<24x4xf32> to vector<24x1xf32>
    %41 = vector.extract_strided_slice %39 {offsets = [0, 0], sizes = [1, 512], strides = [1, 1]} : vector<4x512xf32> to vector<1x512xf32>
    %42 = vector.broadcast %40 : vector<24x1xf32> to vector<24x512xf32>
    %43 = vector.broadcast %41 : vector<1x512xf32> to vector<24x512xf32>
    %44 = arith.mulf %42, %43 : vector<24x512xf32>
    %45 = vector.extract_strided_slice %0 {offsets = [0, 1], sizes = [24, 1], strides = [1, 1]} : vector<24x4xf32> to vector<24x1xf32>
    %46 = vector.extract_strided_slice %39 {offsets = [1, 0], sizes = [1, 512], strides = [1, 1]} : vector<4x512xf32> to vector<1x512xf32>
    %47 = vector.broadcast %45 : vector<24x1xf32> to vector<24x512xf32>
    %48 = vector.broadcast %46 : vector<1x512xf32> to vector<24x512xf32>
    %49 = arith.mulf %47, %48 : vector<24x512xf32>
    %50 = arith.addf %44, %49 : vector<24x512xf32>
    %51 = vector.extract_strided_slice %0 {offsets = [0, 2], sizes = [24, 1], strides = [1, 1]} : vector<24x4xf32> to vector<24x1xf32>
    %52 = vector.extract_strided_slice %39 {offsets = [2, 0], sizes = [1, 512], strides = [1, 1]} : vector<4x512xf32> to vector<1x512xf32>
    %53 = vector.broadcast %51 : vector<24x1xf32> to vector<24x512xf32>
    %54 = vector.broadcast %52 : vector<1x512xf32> to vector<24x512xf32>
    %55 = arith.mulf %53, %54 : vector<24x512xf32>
    %56 = arith.addf %50, %55 : vector<24x512xf32>
    %57 = vector.extract_strided_slice %0 {offsets = [0, 3], sizes = [24, 1], strides = [1, 1]} : vector<24x4xf32> to vector<24x1xf32>
    %58 = vector.extract_strided_slice %39 {offsets = [3, 0], sizes = [1, 512], strides = [1, 1]} : vector<4x512xf32> to vector<1x512xf32>
    %59 = vector.broadcast %57 : vector<24x1xf32> to vector<24x512xf32>
    %60 = vector.broadcast %58 : vector<1x512xf32> to vector<24x512xf32>
    %61 = arith.mulf %59, %60 : vector<24x512xf32>
    %62 = arith.addf %56, %61 : vector<24x512xf32>
    %63 = vector.broadcast %1 : vector<24x1xf32> to vector<24x512xf32>
    %64 = arith.addf %62, %63 : vector<24x512xf32>
    %cst_12 = arith.constant 0.000000e+00 : f32
    %65 = vector.broadcast %cst_12 : f32 to vector<24x512xf32>
    %66 = arith.maximumf %64, %65 : vector<24x512xf32>
    %67 = vector.broadcast %2 : vector<24x1xf32> to vector<24x512xf32>
    %68 = arith.mulf %66, %67 : vector<24x512xf32>
    %cst_13 = arith.constant dense<0.000000e+00> : vector<512xf32>
    %69 = vector.multi_reduction <add>, %68, %cst_13 [0] : vector<24x512xf32> to vector<512xf32>
    %70 = vector.shape_cast %69 : vector<512xf32> to vector<1x512xf32>
    %71 = vector.broadcast %3 : f32 to vector<1x512xf32>
    %72 = arith.addf %70, %71 : vector<1x512xf32>
    %c0_14 = arith.constant 0 : index
    %c512_15 = arith.constant 512 : index
    %73 = vector.load %arg6[%c0_14, %c512_15] : memref<1x1024xf32, #tpu.memory_space<vmem>>, vector<1x512xf32>
    tpu.vector_store %arg6[%c0_14, %c512_15], %72 {strides = array<i32>} : memref<1x1024xf32, #tpu.memory_space<vmem>>, vector<1x512xf32>,
    return
  }
  func.func @transform_0(%arg0: i32) -> (i32, i32) {
    %c0_i32 = arith.constant 0 : i32
    %c0_i32_0 = arith.constant 0 : i32
    return %c0_i32, %arg0 : i32, i32
  }
  func.func @transform_1(%arg0: i32) -> (i32, i32) {
    %c0_i32 = arith.constant 0 : i32
    %c0_i32_0 = arith.constant 0 : i32
    %c0_i32_1 = arith.constant 0 : i32
    return %c0_i32, %c0_i32_0 : i32, i32
  }
  func.func @transform_2(%arg0: i32) -> (i32, i32) {
    %c0_i32 = arith.constant 0 : i32
    %c0_i32_0 = arith.constant 0 : i32
    %c0_i32_1 = arith.constant 0 : i32
    return %c0_i32, %c0_i32_0 : i32, i32
  }
  func.func @transform_3(%arg0: i32) -> (i32, i32) {
    %c0_i32 = arith.constant 0 : i32
    %c0_i32_0 = arith.constant 0 : i32
    %c0_i32_1 = arith.constant 0 : i32
    return %c0_i32, %c0_i32_0 : i32, i32
  }
  func.func @transform_4(%arg0: i32) -> i32 {
    %c0_i32 = arith.constant 0 : i32
    %c0_i32_0 = arith.constant 0 : i32
    return %c0_i32 : i32
  }
  func.func @transform_5(%arg0: i32) -> (i32, i32) {
    %c0_i32 = arith.constant 0 : i32
    %c0_i32_0 = arith.constant 0 : i32
    return %c0_i32, %arg0 : i32, i32
  }
}

</mosaic_0001>

<llo_original>
// kernel: tpu_custom_call.1
$region0: #{tpu_custom_call.1}
  #allocation0 [shape = 'u32[]', space=smem, size = 0x4, offset = 0x4, fixed_abs, tag = 'smem constant byte address 0x4 - core index']
  #allocation1 [shape = 'u32[72,128]{1,0:T(1,128)}', space=vmem, size = 0x9000, scoped, tag = 'internal scratch']
  #allocation2 [shape = 'f32[1]{0:T(128)S(6)}', space=smem, size = 0x200, scoped, tag = 'scoped memory for tpu_custom_call.1']
  %s0 = inlined_call_operand.hbm [shape: f32[4,2048], index: 0, kind: input, shape index: {}]
  %s1 = inlined_call_operand.vmem [shape: f32[24,4], index: 1, kind: input, shape index: {}]
  %s2 = inlined_call_operand.vmem [shape: f32[24,1], index: 2, kind: input, shape index: {}]
  %s3 = inlined_call_operand.vmem [shape: f32[24,1], index: 3, kind: input, shape index: {}]
  %s4 = inlined_call_operand.<no memory space> [shape: f32[1], index: 4, kind: input, shape index: {}]
  %s5 = inlined_call_operand.hbm [shape: f32[1,2048], index: 5, kind: output, shape index: {}]
  %s6 = sld [smem:[#allocation0]]
  $region57: #{tpu_custom_call.1} parent=0
    _
  %s8 = ssub.s32 1, %s6
  %s9 = scalar_select 0, %s8, %s6
  %10 = sst [smem:[#allocation2]] %s4
  $region1: #{tpu_custom_call.1} parent=0
    #allocation3 [shape = 'u8[32768]{0}', space=vmem, size = 0x8000, scoped, tag = 'input window, operand 0']
    #allocation4 [shape = 's32[2]{0}', space=sflag, size = 0x8, scoped, tag = 'scoped memory for tpu_custom_call.1']
    #allocation5 [shape = 's32[2]{0}', space=sflag, size = 0x8, scoped, tag = 'scoped memory for tpu_custom_call.1']
    #allocation6 [shape = 'u8[8192]{0}', space=vmem, size = 0x2000, scoped, tag = 'output window, operand 0']
    %11 = vsyncpa [#allocation4], 0
    %s12 = scalar_lea.sflag [#allocation4], 1
    %13 = vsyncpa %s12, 0
    %14 = vsyncpa [#allocation5], 0
    %s15 = scalar_lea.sflag [#allocation5], 1
    %16 = vsyncpa %s15, 0
    loop: start=0, step=1, limit=4
    $region2: #{tpu_custom_call.1} parent=1 // loop_pre_header
      _
    $region3: #{tpu_custom_call.1} parent=1 // loop_header
      %s18 = sphi 0, %s22
      %p19 = scmp.ge.s32.totalorder %s18, 4
      %s28 = sphi 0, %s30
      %s31 = sphi 0, %s28
      %s32 = sphi 0, %s31
      %s48 = sphi 0, %s32
      %s52 = sphi 0, %s52
      %s54 = sphi 0, %s52
      %s55 = sphi 0, %s54
      %s69 = sphi 0, %s55
      %s73 = sphi 0, %s73
      %s75 = sphi 0, %s73
      %s76 = sphi 0, %s75
      %s90 = sphi 0, %s76
      %s94 = sphi 0, %s94
      %s96 = sphi 0, %s94
      %s97 = sphi 0, %s96
      %s111 = sphi 0, %s97
      %s115 = sphi 0, %s115
      %s117 = sphi 0, %s115
      %s118 = sphi 0, %s117
      %s132 = sphi 0, %s118
      %s138 = sphi 0, %s140
      %s141 = sphi 0, %s138
      %s142 = sphi 0, %s141
      %s158 = sphi 0, %s142
    $region4: #{tpu_custom_call.1} parent=1 // loop_header_branch
      %21 = sbr.rel (%p19) target = $region8
    $region5: #{tpu_custom_call.1} parent=1 // loop_body
      %s23 = ssub.s32 %s18, 1
      %s24 = ssub.s32 %s18, 2
      %s25 = sadd.s32 %s18, 1
      %s26 = ssub.s32 %s18, %s25
      %p27 = scmp.eq.s32.totalorder %s26, 0
      %s29 = sadd.s32 %s28, 1
      %s30 = scalar_select %p27, %s28, %s29
      %p33 = pneg %p27
      %p34 = scmp.eq.s32.totalorder %s18, 1
      %p35 = por %p33, %p34
      %p36 = scmp.ne.s32.totalorder %s28, %s31
      %p37 = scmp.eq.s32.totalorder %s18, 0
      %p38 = por %p36, %p37
      %p39 = scmp.ne.s32.totalorder %s28, %s31
      %p40 = scmp.eq.s32.totalorder %s23, 1
      %p41 = por %p39, %p40
      %p42 = scmp.ne.s32.totalorder %s31, %s32
      %p43 = scmp.eq.s32.totalorder %s23, 0
      %p44 = por %p42, %p43
      %p45 = scmp.ne.s32.totalorder %s31, %s32
      %p46 = scmp.eq.s32.totalorder %s24, 1
      %p47 = por %p45, %p46
      %p49 = scmp.ne.s32.totalorder %s32, %s48
      %p50 = scmp.eq.s32.totalorder %s24, 0
      %p51 = por %p49, %p50
      %s53 = sadd.s32 %s52, 1
      %p56 = scmp.eq.s32.totalorder %s18, 1
      %p57 = scmp.ne.s32.totalorder %s52, %s54
      %p58 = scmp.eq.s32.totalorder %s18, 0
      %p59 = por %p57, %p58
      %p60 = scmp.ne.s32.totalorder %s52, %s54
      %p61 = scmp.eq.s32.totalorder %s23, 1
      %p62 = por %p60, %p61
      %p63 = scmp.ne.s32.totalorder %s54, %s55
      %p64 = scmp.eq.s32.totalorder %s23, 0
      %p65 = por %p63, %p64
      %p66 = scmp.ne.s32.totalorder %s54, %s55
      %p67 = scmp.eq.s32.totalorder %s24, 1
      %p68 = por %p66, %p67
      %p70 = scmp.ne.s32.totalorder %s55, %s69
      %p71 = scmp.eq.s32.totalorder %s24, 0
      %p72 = por %p70, %p71
      %s74 = sadd.s32 %s73, 1
      %p77 = scmp.eq.s32.totalorder %s18, 1
      %p78 = scmp.ne.s32.totalorder %s73, %s75
      %p79 = scmp.eq.s32.totalorder %s18, 0
      %p80 = por %p78, %p79
      %p81 = scmp.ne.s32.totalorder %s73, %s75
      %p82 = scmp.eq.s32.totalorder %s23, 1
      %p83 = por %p81, %p82
      %p84 = scmp.ne.s32.totalorder %s75, %s76
      %p85 = scmp.eq.s32.totalorder %s23, 0
      %p86 = por %p84, %p85
      %p87 = scmp.ne.s32.totalorder %s75, %s76
      %p88 = scmp.eq.s32.totalorder %s24, 1
      %p89 = por %p87, %p88
      %p91 = scmp.ne.s32.totalorder %s76, %s90
      %p92 = scmp.eq.s32.totalorder %s24, 0
      %p93 = por %p91, %p92
      %s95 = sadd.s32 %s94, 1
      %p98 = scmp.eq.s32.totalorder %s18, 1
      %p99 = scmp.ne.s32.totalorder %s94, %s96
      %p100 = scmp.eq.s32.totalorder %s18, 0
      %p101 = por %p99, %p100
      %p102 = scmp.ne.s32.totalorder %s94, %s96
      %p103 = scmp.eq.s32.totalorder %s23, 1
      %p104 = por %p102, %p103
      %p105 = scmp.ne.s32.totalorder %s96, %s97
      %p106 = scmp.eq.s32.totalorder %s23, 0
      %p107 = por %p105, %p106
      %p108 = scmp.ne.s32.totalorder %s96, %s97
      %p109 = scmp.eq.s32.totalorder %s24, 1
      %p110 = por %p108, %p109
      %p112 = scmp.ne.s32.totalorder %s97, %s111
      %p113 = scmp.eq.s32.totalorder %s24, 0
      %p114 = por %p112, %p113
      %s116 = sadd.s32 %s115, 1
      %p119 = scmp.eq.s32.totalorder %s18, 1
      %p120 = scmp.ne.s32.totalorder %s115, %s117
      %p121 = scmp.eq.s32.totalorder %s18, 0
      %p122 = por %p120, %p121
      %p123 = scmp.ne.s32.totalorder %s115, %s117
      %p124 = scmp.eq.s32.totalorder %s23, 1
      %p125 = por %p123, %p124
      %p126 = scmp.ne.s32.totalorder %s117, %s118
      %p127 = scmp.eq.s32.totalorder %s23, 0
      %p128 = por %p126, %p127
      %p129 = scmp.ne.s32.totalorder %s117, %s118
      %p130 = scmp.eq.s32.totalorder %s24, 1
      %p131 = por %p129, %p130
      %p133 = scmp.ne.s32.totalorder %s118, %s132
      %p134 = scmp.eq.s32.totalorder %s24, 0
      %p135 = por %p133, %p134
      %s136 = ssub.s32 %s18, %s25
      %p137 = scmp.eq.s32.totalorder %s136, 0
      %s139 = sadd.s32 %s138, 1
      %s140 = scalar_select %p137, %s138, %s139
      %p143 = pneg %p137
      %p144 = scmp.eq.s32.totalorder %s18, 1
      %p145 = por %p143, %p144
      %p146 = scmp.ne.s32.totalorder %s138, %s141
      %p147 = scmp.eq.s32.totalorder %s18, 0
      %p148 = por %p146, %p147
      %p149 = scmp.ne.s32.totalorder %s138, %s141
      %p150 = scmp.eq.s32.totalorder %s23, 1
      %p151 = por %p149, %p150
      %p152 = scmp.ne.s32.totalorder %s141, %s142
      %p153 = scmp.eq.s32.totalorder %s23, 0
      %p154 = por %p152, %p153
      %p155 = scmp.ne.s32.totalorder %s141, %s142
      %p156 = scmp.eq.s32.totalorder %s24, 1
      %p157 = por %p155, %p156
      %p159 = scmp.ne.s32.totalorder %s142, %s158
      %p160 = scmp.eq.s32.totalorder %s24, 0
      %p161 = por %p159, %p160
      %p162 = scmp.le.s32.totalorder 1, %s18
      %p163 = scmp.lt.s32.totalorder %s18, 3
      %p164 = pnand %p162, %p163
      %p165 = pneg %p164
      // Predicated region
      $region9: #{tpu_custom_call.1} parent=5 // pred_check
        _
      $region10: #{tpu_custom_call.1} parent=5 // pred_check_branch
        %167 = sbr.rel (%p164) target = $region12
      $region11: #{tpu_custom_call.1} parent=5 // pred_region
        %s168 = ssub.s32 %s18, 1
        // Predicated region
        $region13: #{tpu_custom_call.1} parent=11 // pred_check
          %p169 = pneg %p65
        $region14: #{tpu_custom_call.1} parent=11 // pred_check_branch
          %171 = sbr.rel (%p169) target = $region16
        $region15: #{tpu_custom_call.1} parent=11 // pred_region
          _
        $region16: #{tpu_custom_call.1} parent=11 // pred_fallthru
          _
        // Predicated region
        $region17: #{tpu_custom_call.1} parent=11 // pred_check
          %p172 = pneg %p86
        $region18: #{tpu_custom_call.1} parent=11 // pred_check_branch
          %174 = sbr.rel (%p172) target = $region20
        $region19: #{tpu_custom_call.1} parent=11 // pred_region
          _
        $region20: #{tpu_custom_call.1} parent=11 // pred_fallthru
          _
        // Predicated region
        $region21: #{tpu_custom_call.1} parent=11 // pred_check
          %p175 = pneg %p107
        $region22: #{tpu_custom_call.1} parent=11 // pred_check_branch
          %177 = sbr.rel (%p175) target = $region24
        $region23: #{tpu_custom_call.1} parent=11 // pred_region
          _
        $region24: #{tpu_custom_call.1} parent=11 // pred_fallthru
          _
        // Predicated region
        $region25: #{tpu_custom_call.1} parent=11 // pred_check
          %p178 = pneg %p128
        $region26: #{tpu_custom_call.1} parent=11 // pred_check_branch
          %180 = sbr.rel (%p178) target = $region28
        $region27: #{tpu_custom_call.1} parent=11 // pred_region
          _
        $region28: #{tpu_custom_call.1} parent=11 // pred_fallthru
          _
      $region12: #{tpu_custom_call.1} parent=5 // pred_fallthru
        _
      %p181 = scmp.lt.s32.totalorder %s18, 2
      // Predicated region
      $region29: #{tpu_custom_call.1} parent=5 // pred_check
        %p182 = pneg %p181
      $region30: #{tpu_custom_call.1} parent=5 // pred_check_branch
        %184 = sbr.rel (%p182) target = $region32
      $region31: #{tpu_custom_call.1} parent=5 // pred_region
        // Predicated region
        $region33: #{tpu_custom_call.1} parent=31 // pred_check
          %p185 = pneg %p38
        $region34: #{tpu_custom_call.1} parent=31 // pred_check_branch
          %187 = sbr.rel (%p185) target = $region36
        $region35: #{tpu_custom_call.1} parent=31 // pred_region
          %s188 = sand.u32 %s28, 1
          %s189 = scalar_lea.sflag [#allocation4], %s188
          %s190 = sand.u32 %s28, 1
          %s191 = smul.addr %s190, 32
          %s192 = scalar_lea.vmem [#allocation3], %s191
          %s193 = smul.u32 8, %s18
          %195 = vsyncadd %s189, 0
          %s196 = smul.addr %s193, 4
          %s197 = scalar_lea.hbm %s0, %s196
          %s199 = sshll.u32 %s197, 4
          %s200 = int_to_ptr.hbm [resolvable:$true] %s199
          %s201 = sshll.u32 %s192, 4
          %s202 = int_to_ptr.vmem [resolvable:$true] %s201
          %204 = dma.hbm_to_vmem [thread:$0]  %s200, 512, %s202, %s189
        $region36: #{tpu_custom_call.1} parent=31 // pred_fallthru
          _
      $region32: #{tpu_custom_call.1} parent=5 // pred_fallthru
        _
      %p205 = scmp.le.s32.totalorder 1, %s18
      %p206 = scmp.lt.s32.totalorder %s18, 3
      %p207 = pnand %p205, %p206
      %p208 = pneg %p207
      // Predicated region
      $region37: #{tpu_custom_call.1} parent=5 // pred_check
        _
      $region38: #{tpu_custom_call.1} parent=5 // pred_check_branch
        %210 = sbr.rel (%p207) target = $region40
      $region39: #{tpu_custom_call.1} parent=5 // pred_region
        %s211 = ssub.s32 %s18, 1
        %s212 = sand.u32 %s31, 1
        %s213 = scalar_lea.sflag [#allocation4], %s212
        %s214 = sand.u32 %s31, 1
        %s215 = smul.addr %s214, 32
        %s216 = scalar_lea.vmem [#allocation3], %s215
        // Predicated region
        $region41: #{tpu_custom_call.1} parent=39 // pred_check
          %p217 = pneg %p44
        $region42: #{tpu_custom_call.1} parent=39 // pred_check_branch
          %219 = sbr.rel (%p217) target = $region44
        $region43: #{tpu_custom_call.1} parent=39 // pred_region
          %221 = dma.done %s213, 512
        $region44: #{tpu_custom_call.1} parent=39 // pred_fallthru
          _
        %s222 = sand.u32 %s31, 1
        %s223 = scalar_lea.sflag [#allocation4], %s222
        %s224 = sand.u32 %s31, 1
        %s225 = smul.addr %s224, 32
        %s226 = scalar_lea.vmem [#allocation3], %s225
        %p227 = pneg %p44
        %p228 = pneg %p41
        %p229 = pneg %p65
        %p230 = pneg %p62
        %p231 = pneg %p86
        %p232 = pneg %p83
        %p233 = pneg %p107
        %p234 = pneg %p104
        %p235 = pneg %p128
        %p236 = pneg %p125
        %p237 = pneg %p154
        %p238 = pneg %p151
        %s239 = sand.u32 %s141, 1
        %s240 = scalar_lea.sflag [#allocation5], %s239
        %s241 = sand.u32 %s141, 1
        %s242 = smul.addr %s241, 8
        %s243 = scalar_lea.vmem [#allocation6], %s242
        %s244 = smul.u32 8, %s23
        %s245 = smul.u32 8, %s23
        %v246 = vld [vmem:[%s1] sm:$0xff]
        %v247 = vld [vmem:[%s1 + $0x8] sm:$0xff]
        %v248 = vld [vmem:[%s1 + $0x10] sm:$0xff]
        %v249 = vld [vmem:[%s2] sm:$0xff]
        %v250 = vld [vmem:[%s2 + $0x8] sm:$0xff]
        %v251 = vld [vmem:[%s2 + $0x10] sm:$0xff]
        %v252 = vld [vmem:[%s3] sm:$0xff]
        %v253 = vld [vmem:[%s3 + $0x8] sm:$0xff]
        %v254 = vld [vmem:[%s3 + $0x10] sm:$0xff]
        %s255 = sld [smem:[#allocation2]]
        %v256 = vld [vmem:[%s216] sm:$0xff]
        %v257 = vld [vmem:[%s216 + $0x8] sm:$0xff]
        %259 = vset.pattern.permute.xlu0 0
        %260 = vperm.xlu0 %259, %v246
        %v261 = vpop.permute.xlu0 %260
        %264 = vset.pattern.permute.xlu0 0
        %265 = vperm.xlu0 %264, %v247
        %v266 = vpop.permute.xlu0 %265
        %269 = vset.pattern.permute.xlu0 0
        %270 = vperm.xlu0 %269, %v248
        %v271 = vpop.permute.xlu0 %270
        %v275 = vperm.slane %v256, 0
        %v276 = vperm.slane %v256, 4
        %v277 = vperm.slane %v257, 0
        %v278 = vperm.slane %v257, 4
        %v283 = vperm.slane %v275, 0
        %v284 = vperm.slane %v276, 0
        %v285 = vperm.slane %v277, 0
        %v286 = vperm.slane %v278, 0
        %v287 = vmul.f32 %v261, %v283
        %v288 = vmul.f32 %v261, %v284
        %v289 = vmul.f32 %v261, %v285
        %v290 = vmul.f32 %v261, %v286
        %v291 = vmul.f32 %v266, %v283
        %v292 = vmul.f32 %v266, %v284
        %v293 = vmul.f32 %v266, %v285
        %v294 = vmul.f32 %v266, %v286
        %v295 = vmul.f32 %v271, %v283
        %v296 = vmul.f32 %v271, %v284
        %v297 = vmul.f32 %v271, %v285
        %v298 = vmul.f32 %v271, %v286
        %299 = vset.pattern.permute.xlu0 1
        %300 = vperm.xlu0 %299, %v246
        %v301 = vpop.permute.xlu0 %300
        %303 = vset.pattern.permute.xlu0 1
        %304 = vperm.xlu0 %303, %v247
        %v305 = vpop.permute.xlu0 %304
        %307 = vset.pattern.permute.xlu0 1
        %308 = vperm.xlu0 %307, %v248
        %v309 = vpop.permute.xlu0 %308
        %v311 = vperm.slane %v256, 1
        %v312 = vperm.slane %v256, 5
        %v313 = vperm.slane %v257, 1
        %v314 = vperm.slane %v257, 5
        %v319 = vperm.slane %v311, 1
        %v320 = vperm.slane %v312, 1
        %v321 = vperm.slane %v313, 1
        %v322 = vperm.slane %v314, 1
        %v323 = vmul.f32 %v301, %v319
        %v324 = vmul.f32 %v301, %v320
        %v325 = vmul.f32 %v301, %v321
        %v326 = vmul.f32 %v301, %v322
        %v327 = vmul.f32 %v305, %v319
        %v328 = vmul.f32 %v305, %v320
        %v329 = vmul.f32 %v305, %v321
        %v330 = vmul.f32 %v305, %v322
        %v331 = vmul.f32 %v309, %v319
        %v332 = vmul.f32 %v309, %v320
        %v333 = vmul.f32 %v309, %v321
        %v334 = vmul.f32 %v309, %v322
        %v335 = vadd.f32 %v287, %v323
        %v336 = vadd.f32 %v288, %v324
        %v337 = vadd.f32 %v289, %v325
        %v338 = vadd.f32 %v290, %v326
        %v339 = vadd.f32 %v291, %v327
        %v340 = vadd.f32 %v292, %v328
        %v341 = vadd.f32 %v293, %v329
        %v342 = vadd.f32 %v294, %v330
        %v343 = vadd.f32 %v295, %v331
        %v344 = vadd.f32 %v296, %v332
        %v345 = vadd.f32 %v297, %v333
        %v346 = vadd.f32 %v298, %v334
        %347 = vset.pattern.permute.xlu0 2
        %348 = vperm.xlu0 %347, %v246
        %v349 = vpop.permute.xlu0 %348
        %351 = vset.pattern.permute.xlu0 2
        %352 = vperm.xlu0 %351, %v247
        %v353 = vpop.permute.xlu0 %352
        %355 = vset.pattern.permute.xlu0 2
        %356 = vperm.xlu0 %355, %v248
        %v357 = vpop.permute.xlu0 %356
        %v359 = vperm.slane %v256, 2
        %v360 = vperm.slane %v256, 6
        %v361 = vperm.slane %v257, 2
        %v362 = vperm.slane %v257, 6
        %v367 = vperm.slane %v359, 2
        %v368 = vperm.slane %v360, 2
        %v369 = vperm.slane %v361, 2
        %v370 = vperm.slane %v362, 2
        %v371 = vmul.f32 %v349, %v367
        %v372 = vmul.f32 %v349, %v368
        %v373 = vmul.f32 %v349, %v369
        %v374 = vmul.f32 %v349, %v370
        %v375 = vmul.f32 %v353, %v367
        %v376 = vmul.f32 %v353, %v368
        %v377 = vmul.f32 %v353, %v369
        %v378 = vmul.f32 %v353, %v370
        %v379 = vmul.f32 %v357, %v367
        %v380 = vmul.f32 %v357, %v368
        %v381 = vmul.f32 %v357, %v369
        %v382 = vmul.f32 %v357, %v370
        %v383 = vadd.f32 %v335, %v371
        %v384 = vadd.f32 %v336, %v372
        %v385 = vadd.f32 %v337, %v373
        %v386 = vadd.f32 %v338, %v374
        %v387 = vadd.f32 %v339, %v375
        %v388 = vadd.f32 %v340, %v376
        %v389 = vadd.f32 %v341, %v377
        %v390 = vadd.f32 %v342, %v378
        %v391 = vadd.f32 %v343, %v379
        %v392 = vadd.f32 %v344, %v380
        %v393 = vadd.f32 %v345, %v381
        %v394 = vadd.f32 %v346, %v382
        %395 = vset.pattern.permute.xlu0 3
        %396 = vperm.xlu0 %395, %v246
        %v397 = vpop.permute.xlu0 %396
        %399 = vset.pattern.permute.xlu0 3
        %400 = vperm.xlu0 %399, %v247
        %v401 = vpop.permute.xlu0 %400
        %403 = vset.pattern.permute.xlu0 3
        %404 = vperm.xlu0 %403, %v248
        %v405 = vpop.permute.xlu0 %404
        %v407 = vperm.slane %v256, 3
        %v408 = vperm.slane %v256, 7
        %v409 = vperm.slane %v257, 3
        %v410 = vperm.slane %v257, 7
        %v415 = vperm.slane %v407, 3
        %v416 = vperm.slane %v408, 3
        %v417 = vperm.slane %v409, 3
        %v418 = vperm.slane %v410, 3
        %v419 = vmul.f32 %v397, %v415
        %v420 = vmul.f32 %v397, %v416
        %v421 = vmul.f32 %v397, %v417
        %v422 = vmul.f32 %v397, %v418
        %v423 = vmul.f32 %v401, %v415
        %v424 = vmul.f32 %v401, %v416
        %v425 = vmul.f32 %v401, %v417
        %v426 = vmul.f32 %v401, %v418
        %v427 = vmul.f32 %v405, %v415
        %v428 = vmul.f32 %v405, %v416
        %v429 = vmul.f32 %v405, %v417
        %v430 = vmul.f32 %v405, %v418
        %v431 = vadd.f32 %v383, %v419
        %v432 = vadd.f32 %v384, %v420
        %v433 = vadd.f32 %v385, %v421
        %v434 = vadd.f32 %v386, %v422
        %v435 = vadd.f32 %v387, %v423
        %v436 = vadd.f32 %v388, %v424
        %v437 = vadd.f32 %v389, %v425
        %v438 = vadd.f32 %v390, %v426
        %v439 = vadd.f32 %v391, %v427
        %v440 = vadd.f32 %v392, %v428
        %v441 = vadd.f32 %v393, %v429
        %v442 = vadd.f32 %v394, %v430
        %444 = vset.pattern.permute.xlu0 0
        %445 = vperm.xlu0 %444, %v249
        %v446 = vpop.permute.xlu0 %445
        %449 = vset.pattern.permute.xlu0 0
        %450 = vperm.xlu0 %449, %v250
        %v451 = vpop.permute.xlu0 %450
        %454 = vset.pattern.permute.xlu0 0
        %455 = vperm.xlu0 %454, %v251
        %v456 = vpop.permute.xlu0 %455
        %v458 = vadd.f32 %v431, %v446
        %v459 = vadd.f32 %v432, %v446
        %v460 = vadd.f32 %v433, %v446
        %v461 = vadd.f32 %v434, %v446
        %v462 = vadd.f32 %v435, %v451
        %v463 = vadd.f32 %v436, %v451
        %v464 = vadd.f32 %v437, %v451
        %v465 = vadd.f32 %v438, %v451
        %v466 = vadd.f32 %v439, %v456
        %v467 = vadd.f32 %v440, %v456
        %v468 = vadd.f32 %v441, %v456
        %v469 = vadd.f32 %v442, %v456
        %v470 = vmax.f32 %v458, 0.0
        %v471 = vmax.f32 %v459, 0.0
        %v472 = vmax.f32 %v460, 0.0
        %v473 = vmax.f32 %v461, 0.0
        %v474 = vmax.f32 %v462, 0.0
        %v475 = vmax.f32 %v463, 0.0
        %v476 = vmax.f32 %v464, 0.0
        %v477 = vmax.f32 %v465, 0.0
        %v478 = vmax.f32 %v466, 0.0
        %v479 = vmax.f32 %v467, 0.0
        %v480 = vmax.f32 %v468, 0.0
        %v481 = vmax.f32 %v469, 0.0
        %483 = vset.pattern.permute.xlu0 0
        %484 = vperm.xlu0 %483, %v252
        %v485 = vpop.permute.xlu0 %484
        %488 = vset.pattern.permute.xlu0 0
        %489 = vperm.xlu0 %488, %v253
        %v490 = vpop.permute.xlu0 %489
        %493 = vset.pattern.permute.xlu0 0
        %494 = vperm.xlu0 %493, %v254
        %v495 = vpop.permute.xlu0 %494
        %v497 = vmul.f32 %v470, %v485
        %v498 = vmul.f32 %v471, %v485
        %v499 = vmul.f32 %v472, %v485
        %v500 = vmul.f32 %v473, %v485
        %v501 = vmul.f32 %v474, %v490
        %v502 = vmul.f32 %v475, %v490
        %v503 = vmul.f32 %v476, %v490
        %v504 = vmul.f32 %v477, %v490
        %v505 = vmul.f32 %v478, %v495
        %v506 = vmul.f32 %v479, %v495
        %v507 = vmul.f32 %v480, %v495
        %v508 = vmul.f32 %v481, %v495
        %v509 = vadd.f32 %v497, %v501
        %v510 = vadd.f32 %v509, %v505
        %v511 = vrot.slane %v510, 4
        %v512 = vadd.f32 %v510, %v511
        %v513 = vrot.slane %v512, 2
        %v514 = vadd.f32 %v512, %v513
        %v515 = vrot.slane %v514, 1
        %v516 = vadd.f32 %v514, %v515
        %v517 = vadd.f32 %v498, %v502
        %v518 = vadd.f32 %v517, %v506
        %v519 = vrot.slane %v518, 4
        %v520 = vadd.f32 %v518, %v519
        %v521 = vrot.slane %v520, 2
        %v522 = vadd.f32 %v520, %v521
        %v523 = vrot.slane %v522, 1
        %v524 = vadd.f32 %v522, %v523
        %v525 = vadd.f32 %v499, %v503
        %v526 = vadd.f32 %v525, %v507
        %v527 = vrot.slane %v526, 4
        %v528 = vadd.f32 %v526, %v527
        %v529 = vrot.slane %v528, 2
        %v530 = vadd.f32 %v528, %v529
        %v531 = vrot.slane %v530, 1
        %v532 = vadd.f32 %v530, %v531
        %v533 = vadd.f32 %v500, %v504
        %v534 = vadd.f32 %v533, %v508
        %v535 = vrot.slane %v534, 4
        %v536 = vadd.f32 %v534, %v535
        %v537 = vrot.slane %v536, 2
        %v538 = vadd.f32 %v536, %v537
        %v539 = vrot.slane %v538, 1
        %v540 = vadd.f32 %v538, %v539
        %v541 = vstv %s255
        %v542 = vadd.f32 %v516, %v541
        %v543 = vadd.f32 %v524, %v541
        %v544 = vadd.f32 %v532, %v541
        %v545 = vadd.f32 %v540, %v541
        %v550 = vrot.slane %v543, 7
        %v551 = vrot.slane %v544, 6
        %v552 = vrot.slane %v545, 5
        %vm553 = vcmask 1040384
        %v554 = vsel %vm553, %v542, %v550
        %vm555 = vcmask 1042434
        %v556 = vsel %vm555, %v551, %v552
        %vm557 = vcmask 1041408
        %v558 = vsel %vm557, %v554, %v556
        %v560 = vlaneseq
        %vm561 = vcmp.ge.s32.totalorder %v560, 0
        %vm562 = vcmp.lt.s32.totalorder %v560, 512
        %vm563 = vmand %vm561, %vm562
        %564 = vst.msk [vmem:[%s243] sm:$0xf] %vm563, %v558
        %v565 = vld [vmem:[%s216 + $0x10] sm:$0xff]
        %v566 = vld [vmem:[%s216 + $0x18] sm:$0xff]
        %v569 = vperm.slane %v565, 0
        %v570 = vperm.slane %v565, 4
        %v571 = vperm.slane %v566, 0
        %v572 = vperm.slane %v566, 4
        %v577 = vperm.slane %v569, 0
        %v578 = vperm.slane %v570, 0
        %v579 = vperm.slane %v571, 0
        %v580 = vperm.slane %v572, 0
        %v581 = vmul.f32 %v261, %v577
        %v582 = vmul.f32 %v261, %v578
        %v583 = vmul.f32 %v261, %v579
        %v584 = vmul.f32 %v261, %v580
        %v585 = vmul.f32 %v266, %v577
        %v586 = vmul.f32 %v266, %v578
        %v587 = vmul.f32 %v266, %v579
        %v588 = vmul.f32 %v266, %v580
        %v589 = vmul.f32 %v271, %v577
        %v590 = vmul.f32 %v271, %v578
        %v591 = vmul.f32 %v271, %v579
        %v592 = vmul.f32 %v271, %v580
        %v593 = vperm.slane %v565, 1
        %v594 = vperm.slane %v565, 5
        %v595 = vperm.slane %v566, 1
        %v596 = vperm.slane %v566, 5
        %v601 = vperm.slane %v593, 1
        %v602 = vperm.slane %v594, 1
        %v603 = vperm.slane %v595, 1
        %v604 = vperm.slane %v596, 1
        %v605 = vmul.f32 %v301, %v601
        %v606 = vmul.f32 %v301, %v602
        %v607 = vmul.f32 %v301, %v603
        %v608 = vmul.f32 %v301, %v604
        %v609 = vmul.f32 %v305, %v601
        %v610 = vmul.f32 %v305, %v602
        %v611 = vmul.f32 %v305, %v603
        %v612 = vmul.f32 %v305, %v604
        %v613 = vmul.f32 %v309, %v601
        %v614 = vmul.f32 %v309, %v602
        %v615 = vmul.f32 %v309, %v603
        %v616 = vmul.f32 %v309, %v604
        %v617 = vadd.f32 %v581, %v605
        %v618 = vadd.f32 %v582, %v606
        %v619 = vadd.f32 %v583, %v607
        %v620 = vadd.f32 %v584, %v608
        %v621 = vadd.f32 %v585, %v609
        %v622 = vadd.f32 %v586, %v610
        %v623 = vadd.f32 %v587, %v611
        %v624 = vadd.f32 %v588, %v612
        %v625 = vadd.f32 %v589, %v613
        %v626 = vadd.f32 %v590, %v614
        %v627 = vadd.f32 %v591, %v615
        %v628 = vadd.f32 %v592, %v616
        %v629 = vperm.slane %v565, 2
        %v630 = vperm.slane %v565, 6
        %v631 = vperm.slane %v566, 2
        %v632 = vperm.slane %v566, 6
        %v637 = vperm.slane %v629, 2
        %v638 = vperm.slane %v630, 2
        %v639 = vperm.slane %v631, 2
        %v640 = vperm.slane %v632, 2
        %v641 = vmul.f32 %v349, %v637
        %v642 = vmul.f32 %v349, %v638
        %v643 = vmul.f32 %v349, %v639
        %v644 = vmul.f32 %v349, %v640
        %v645 = vmul.f32 %v353, %v637
        %v646 = vmul.f32 %v353, %v638
        %v647 = vmul.f32 %v353, %v639
        %v648 = vmul.f32 %v353, %v640
        %v649 = vmul.f32 %v357, %v637
        %v650 = vmul.f32 %v357, %v638
        %v651 = vmul.f32 %v357, %v639
        %v652 = vmul.f32 %v357, %v640
        %v653 = vadd.f32 %v617, %v641
        %v654 = vadd.f32 %v618, %v642
        %v655 = vadd.f32 %v619, %v643
        %v656 = vadd.f32 %v620, %v644
        %v657 = vadd.f32 %v621, %v645
        %v658 = vadd.f32 %v622, %v646
        %v659 = vadd.f32 %v623, %v647
        %v660 = vadd.f32 %v624, %v648
        %v661 = vadd.f32 %v625, %v649
        %v662 = vadd.f32 %v626, %v650
        %v663 = vadd.f32 %v627, %v651
        %v664 = vadd.f32 %v628, %v652
        %v665 = vperm.slane %v565, 3
        %v666 = vperm.slane %v565, 7
        %v667 = vperm.slane %v566, 3
        %v668 = vperm.slane %v566, 7
        %v673 = vperm.slane %v665, 3
        %v674 = vperm.slane %v666, 3
        %v675 = vperm.slane %v667, 3
        %v676 = vperm.slane %v668, 3
        %v677 = vmul.f32 %v397, %v673
        %v678 = vmul.f32 %v397, %v674
        %v679 = vmul.f32 %v397, %v675
        %v680 = vmul.f32 %v397, %v676
        %v681 = vmul.f32 %v401, %v673
        %v682 = vmul.f32 %v401, %v674
        %v683 = vmul.f32 %v401, %v675
        %v684 = vmul.f32 %v401, %v676
        %v685 = vmul.f32 %v405, %v673
        %v686 = vmul.f32 %v405, %v674
        %v687 = vmul.f32 %v405, %v675
        %v688 = vmul.f32 %v405, %v676
        %v689 = vadd.f32 %v653, %v677
        %v690 = vadd.f32 %v654, %v678
        %v691 = vadd.f32 %v655, %v679
        %v692 = vadd.f32 %v656, %v680
        %v693 = vadd.f32 %v657, %v681
        %v694 = vadd.f32 %v658, %v682
        %v695 = vadd.f32 %v659, %v683
        %v696 = vadd.f32 %v660, %v684
        %v697 = vadd.f32 %v661, %v685
        %v698 = vadd.f32 %v662, %v686
        %v699 = vadd.f32 %v663, %v687
        %v700 = vadd.f32 %v664, %v688
        %v701 = vadd.f32 %v689, %v446
        %v702 = vadd.f32 %v690, %v446
        %v703 = vadd.f32 %v691, %v446
        %v704 = vadd.f32 %v692, %v446
        %v705 = vadd.f32 %v693, %v451
        %v706 = vadd.f32 %v694, %v451
        %v707 = vadd.f32 %v695, %v451
        %v708 = vadd.f32 %v696, %v451
        %v709 = vadd.f32 %v697, %v456
        %v710 = vadd.f32 %v698, %v456
        %v711 = vadd.f32 %v699, %v456
        %v712 = vadd.f32 %v700, %v456
        %v713 = vmax.f32 %v701, 0.0
        %v714 = vmax.f32 %v702, 0.0
        %v715 = vmax.f32 %v703, 0.0
        %v716 = vmax.f32 %v704, 0.0
        %v717 = vmax.f32 %v705, 0.0
        %v718 = vmax.f32 %v706, 0.0
        %v719 = vmax.f32 %v707, 0.0
        %v720 = vmax.f32 %v708, 0.0
        %v721 = vmax.f32 %v709, 0.0
        %v722 = vmax.f32 %v710, 0.0
        %v723 = vmax.f32 %v711, 0.0
        %v724 = vmax.f32 %v712, 0.0
        %v725 = vmul.f32 %v713, %v485
        %v726 = vmul.f32 %v714, %v485
        %v727 = vmul.f32 %v715, %v485
        %v728 = vmul.f32 %v716, %v485
        %v729 = vmul.f32 %v717, %v490
        %v730 = vmul.f32 %v718, %v490
        %v731 = vmul.f32 %v719, %v490
        %v732 = vmul.f32 %v720, %v490
        %v733 = vmul.f32 %v721, %v495
        %v734 = vmul.f32 %v722, %v495
        %v735 = vmul.f32 %v723, %v495
        %v736 = vmul.f32 %v724, %v495
        %v737 = vadd.f32 %v725, %v729
        %v738 = vadd.f32 %v737, %v733
        %v739 = vrot.slane %v738, 4
        %v740 = vadd.f32 %v738, %v739
        %v741 = vrot.slane %v740, 2
        %v742 = vadd.f32 %v740, %v741
        %v743 = vrot.slane %v742, 1
        %v744 = vadd.f32 %v742, %v743
        %v745 = vadd.f32 %v726, %v730
        %v746 = vadd.f32 %v745, %v734
        %v747 = vrot.slane %v746, 4
        %v748 = vadd.f32 %v746, %v747
        %v749 = vrot.slane %v748, 2
        %v750 = vadd.f32 %v748, %v749
        %v751 = vrot.slane %v750, 1
        %v752 = vadd.f32 %v750, %v751
        %v753 = vadd.f32 %v727, %v731
        %v754 = vadd.f32 %v753, %v735
        %v755 = vrot.slane %v754, 4
        %v756 = vadd.f32 %v754, %v755
        %v757 = vrot.slane %v756, 2
        %v758 = vadd.f32 %v756, %v757
        %v759 = vrot.slane %v758, 1
        %v760 = vadd.f32 %v758, %v759
        %v761 = vadd.f32 %v728, %v732
        %v762 = vadd.f32 %v761, %v736
        %v763 = vrot.slane %v762, 4
        %v764 = vadd.f32 %v762, %v763
        %v765 = vrot.slane %v764, 2
        %v766 = vadd.f32 %v764, %v765
        %v767 = vrot.slane %v766, 1
        %v768 = vadd.f32 %v766, %v767
        %v769 = vadd.f32 %v744, %v541
        %v770 = vadd.f32 %v752, %v541
        %v771 = vadd.f32 %v760, %v541
        %v772 = vadd.f32 %v768, %v541
        %v777 = vrot.slane %v770, 7
        %v778 = vrot.slane %v771, 6
        %v779 = vrot.slane %v772, 5
        %v780 = vsel %vm553, %v769, %v777
        %v781 = vsel %vm555, %v778, %v779
        %v782 = vsel %vm557, %v780, %v781
        %784 = vst.msk [vmem:[%s243 + $0x4] sm:$0xf] %vm563, %v782
        %s785 = sand.u32 %s141, 1
        %s786 = scalar_lea.sflag [#allocation5], %s785
        %s787 = sand.u32 %s141, 1
        %s788 = smul.addr %s787, 8
        %s789 = scalar_lea.vmem [#allocation6], %s788
        // Predicated region
        $region45: #{tpu_custom_call.1} parent=39 // pred_check
          %p790 = pneg %p151
        $region46: #{tpu_custom_call.1} parent=39 // pred_check_branch
          %792 = sbr.rel (%p790) target = $region48
        $region47: #{tpu_custom_call.1} parent=39 // pred_region
          %s793 = smul.u32 8, %s23
          %795 = vsyncadd %s786, 0
          %s796 = scalar_lea.hbm %s5, %s793
          %s798 = sshll.u32 %s789, 4
          %s799 = int_to_ptr.vmem [resolvable:$true] %s798
          %s800 = sshll.u32 %s796, 4
          %s801 = int_to_ptr.hbm [resolvable:$true] %s800
          %803 = dma.vmem_to_hbm [thread:$0]  %s799, 128, %s801, %s786
        $region48: #{tpu_custom_call.1} parent=39 // pred_fallthru
          _
      $region40: #{tpu_custom_call.1} parent=5 // pred_fallthru
        _
      %p804 = scmp.le.s32.totalorder 2, %s18
      // Predicated region
      $region49: #{tpu_custom_call.1} parent=5 // pred_check
        %p805 = pneg %p804
      $region50: #{tpu_custom_call.1} parent=5 // pred_check_branch
        %807 = sbr.rel (%p805) target = $region52
      $region51: #{tpu_custom_call.1} parent=5 // pred_region
        %s808 = ssub.s32 %s18, 2
        // Predicated region
        $region53: #{tpu_custom_call.1} parent=51 // pred_check
          %p809 = pneg %p157
        $region54: #{tpu_custom_call.1} parent=51 // pred_check_branch
          %811 = sbr.rel (%p809) target = $region56
        $region55: #{tpu_custom_call.1} parent=51 // pred_region
          %s812 = sand.u32 %s142, 1
          %s813 = scalar_lea.sflag [#allocation5], %s812
          %s814 = sand.u32 %s142, 1
          %s815 = smul.addr %s814, 8
          %s816 = scalar_lea.vmem [#allocation6], %s815
          %818 = dma.done %s813, 128
        $region56: #{tpu_custom_call.1} parent=51 // pred_fallthru
          _
      $region52: #{tpu_custom_call.1} parent=5 // pred_fallthru
        _
    $region6: #{tpu_custom_call.1} parent=1 // loop_footer
      %s22 = sadd.s32 1, %s18
    $region7: #{tpu_custom_call.1} parent=1 // loop_footer_branch
      %17 = sbr.rel target = $region3
    $region8: #{tpu_custom_call.1} parent=1 // loop_exit
      _
    %819 = vsyncpa [#allocation4], 1
    %s820 = scalar_lea.sflag [#allocation4], 1
    %821 = vsyncpa %s820, 1
    %822 = vsyncpa [#allocation5], 1
    %s823 = scalar_lea.sflag [#allocation5], 1
    %824 = vsyncpa %s823, 1

</llo_original>
